<compile_context>
chip_gen: v5e
topology: v5e:2x2
jax: 0.10.0
libtpu: 0.0.40
codegen_flags: <defaults>
</compile_context>

<pallas_src>
import jax
import jax.numpy as jnp
from jax.experimental import pallas as pl
from jax.experimental.pallas import tpu as pltpu


def _se_kernel(x_ref, xse_ref, w1t_ref, b1_ref, w2t_ref, b2_ref, out_ref):
    # MXU operand dtype follows the (possibly bf16) weight dtype; accumulation is fp32.
    mxu_dtype = w1t_ref.dtype

    xse = xse_ref[...].astype(mxu_dtype)

    # conv_reduce: Linear(C, C) -> ReLU
    h = jnp.dot(xse, w1t_ref[...], preferred_element_type=jnp.float32)
    h = jnp.maximum(h + b1_ref[...], 0.0)          # (tm, Cp) + (1, Cp)

    # conv_expand: Linear(C, C) -> Sigmoid gate
    g = jnp.dot(h.astype(mxu_dtype), w2t_ref[...], preferred_element_type=jnp.float32)
    g = jax.nn.sigmoid(g + b2_ref[...])

    out_ref[...] = (x_ref[...].astype(jnp.float32) * g).astype(out_ref.dtype)


def _round_up(a, b):
    return ((a + b - 1) // b) * b


def _choose_row_tile(M, C_pad, act_itemsize, mxu_itemsize, budget_bytes):
    """Largest row tile (multiple of 8, <=1024) whose pipeline footprint fits the budget."""
    # Double-buffered activation streams: x, x_se inputs + output.
    per_row_io = 2 * 3 * C_pad * act_itemsize
    # fp32 intermediates (h, g, gated product) live in VMEM/vregs during compute.
    per_row_tmp = 3 * C_pad * 4
    per_row = per_row_io + per_row_tmp
    # Weights + biases are grid-resident but still double-buffered by the default pipeline.
    weight_bytes = 2 * (2 * C_pad * C_pad * mxu_itemsize + 2 * C_pad * 4)
    avail = max(budget_bytes - weight_bytes, 8 * per_row)
    tm = int(avail // per_row)
    tm = max(8, min(1024, tm))
    # Don't pad tiny inputs up to a huge tile.
    tm = min(tm, _round_up(M, 8))
    return max(8, (tm // 8) * 8)


def se_layer_linear(x, x_se, w1, b1, w2, b2, *, tm=None, mxu_dtype=None,
                    vmem_budget_bytes=32 * 1024 * 1024):
    """x, x_se: (B, N, C).  w1, w2: (C, C) PyTorch-convention (out, in).  b1, b2: (C,).

    tm:         row tile (multiple of 8).  Default: auto-sized against `vmem_budget_bytes`.
    mxu_dtype:  dtype fed to the MXU (e.g. jnp.bfloat16).  Default: the input dtype.
                Accumulation is always fp32.
    """
    B, N, C = x.shape
    assert x_se.shape == x.shape
    M = B * N

    if mxu_dtype is None:
        mxu_dtype = x_se.dtype  # keep full fp32 accuracy unless bf16 is explicitly requested

    C_pad = _round_up(C, 128)
    act_itemsize = jnp.dtype(x.dtype).itemsize
    mxu_itemsize = jnp.dtype(mxu_dtype).itemsize

    if tm is None:
        tm = _choose_row_tile(M, C_pad, act_itemsize, mxu_itemsize, vmem_budget_bytes)
    assert tm >= 8 and tm % 8 == 0, "row tile must be a multiple of 8 sublanes"

    M_pad = _round_up(M, tm)

    # Flatten + zero-pad rows and channels.  Zero padding is exact: padded output
    # channels/rows come out as x(=0) * gate = 0 and are sliced off below.
    x2 = jnp.pad(x.reshape(M, C), ((0, M_pad - M), (0, C_pad - C)))
    xse2 = jnp.pad(x_se.reshape(M, C), ((0, M_pad - M), (0, C_pad - C)))

    # Pre-transpose weights so the kernel does a straight (tm,Cp)@(Cp,Cp) matmul.
    w1t = jnp.pad(jnp.asarray(w1, mxu_dtype).T, ((0, C_pad - C), (0, C_pad - C)))
    w2t = jnp.pad(jnp.asarray(w2, mxu_dtype).T, ((0, C_pad - C), (0, C_pad - C)))
    b1r = jnp.pad(jnp.asarray(b1, jnp.float32).reshape(1, C), ((0, 0), (0, C_pad - C)))
    b2r = jnp.pad(jnp.asarray(b2, jnp.float32).reshape(1, C), ((0, 0), (0, C_pad - C)))

    grid = (M_pad // tm,)

    row_spec = pl.BlockSpec((tm, C_pad), lambda i: (i, 0))
    full_w_spec = pl.BlockSpec((C_pad, C_pad), lambda i: (0, 0))
    full_b_spec = pl.BlockSpec((1, C_pad), lambda i: (0, 0))

    # TODO(synk): on v7x, verify via trace that the single "parallel" grid axis is split
    # across both TensorCores; if not, add an explicit leading core axis / core_map.
    out2 = pl.pallas_call(
        _se_kernel,
        out_shape=jax.ShapeDtypeStruct((M_pad, C_pad), x.dtype),
        grid_spec=pltpu.PrefetchScalarGridSpec(
            num_scalar_prefetch=0,
            grid=grid,
            in_specs=[row_spec, row_spec, full_w_spec, full_b_spec,
                      full_w_spec, full_b_spec],
            out_specs=row_spec,
        ),
        compiler_params=pltpu.CompilerParams(
            dimension_semantics=("parallel",),
            # Above the default scoped limit, but safely below v7x's 64 MiB physical VMEM.
            vmem_limit_bytes=48 * 1024 * 1024,
        ),
    )(x2, xse2, w1t, b1r, w2t, b2r)

    return out2[:M, :C].reshape(B, N, C)


def _reference(x, x_se, w1, b1, w2, b2):
    h = jnp.einsum("bnc,oc->bno", x_se, w1) + b1
    h = jnp.maximum(h, 0.0)
    g = jnp.einsum("bnc,oc->bno", h, w2) + b2
    return x * jax.nn.sigmoid(g)


if __name__ == "__main__":
    key = jax.random.PRNGKey(0)
    B, N, C = 2, 8, 32      # small shapes; M = B*N = 16 rows, C = 32 channels

    kx, kse, kw1, kb1, kw2, kb2 = jax.random.split(key, 6)
    x = jax.random.normal(kx, (B, N, C), dtype=jnp.float32)
    x_se = jax.random.normal(kse, (B, N, C), dtype=jnp.float32)

    # Deterministic parameter init (mimics nn.Linear uniform(-1/sqrt(C), 1/sqrt(C)))
    bound = 1.0 / (C ** 0.5)
    w1 = jax.random.uniform(kw1, (C, C), minval=-bound, maxval=bound, dtype=jnp.float32)
    b1 = jax.random.uniform(kb1, (C,), minval=-bound, maxval=bound, dtype=jnp.float32)
    w2 = jax.random.uniform(kw2, (C, C), minval=-bound, maxval=bound, dtype=jnp.float32)
    b2 = jax.random.uniform(kb2, (C,), minval=-bound, maxval=bound, dtype=jnp.float32)

    ref = _reference(x, x_se, w1, b1, w2, b2)

    # Default path: fp32 MXU operands, fp32 accumulation -> tight tolerance.
    out = se_layer_linear(x, x_se, w1, b1, w2, b2)
    out = jax.block_until_ready(out)
    assert jnp.allclose(out, ref, atol=1e-5, rtol=1e-5), "mismatch vs reference (fp32)"

    # Optional bf16-operand path (fp32 accumulation) -> looser tolerance.
    out_bf16 = se_layer_linear(x, x_se, w1, b1, w2, b2, mxu_dtype=jnp.bfloat16)
    out_bf16 = jax.block_until_ready(out_bf16)
    assert jnp.allclose(out_bf16, ref, atol=5e-2, rtol=5e-2), "mismatch vs reference (bf16 MXU)"

    print("KERNEL_OK")
</pallas_src>

<mosaic_0001>
module attributes {stable_mosaic.version = 11 : i64} {
  func.func @_se_kernel(%arg0: i32, %arg1: memref<16x128xf32, #tpu.memory_space<vmem>>, %arg2: memref<16x128xf32, #tpu.memory_space<vmem>>, %arg3: memref<128x128xf32, #tpu.memory_space<vmem>>, %arg4: memref<1x128xf32, #tpu.memory_space<vmem>>, %arg5: memref<128x128xf32, #tpu.memory_space<vmem>>, %arg6: memref<1x128xf32, #tpu.memory_space<vmem>>, %arg7: memref<16x128xf32, #tpu.memory_space<vmem>>) attributes {dimension_semantics = [#tpu.dimension_semantics<parallel>], iteration_bounds = array<i64: 1>, scalar_prefetch = 0 : i64, scratch_operands = 0 : i64, tpu.core_type = #tpu.core_type<tc>, window_params = [{transform_indices = @transform_0, window_bounds = array<i64: 16, 128>}, {transform_indices = @transform_1, window_bounds = array<i64: 16, 128>}, {pipeline_mode = #tpu.pipeline_mode<synchronous>, transform_indices = @transform_2, window_bounds = array<i64: 128, 128>}, {pipeline_mode = #tpu.pipeline_mode<synchronous>, transform_indices = @transform_3, window_bounds = array<i64: 1, 128>}, {pipeline_mode = #tpu.pipeline_mode<synchronous>, transform_indices = @transform_4, window_bounds = array<i64: 128, 128>}, {pipeline_mode = #tpu.pipeline_mode<synchronous>, transform_indices = @transform_5, window_bounds = array<i64: 1, 128>}, {transform_indices = @transform_6, window_bounds = array<i64: 16, 128>}]} {
    %c0 = arith.constant 0 : index
    %c0_0 = arith.constant 0 : index
    %0 = vector.load %arg2[%c0, %c0_0] : memref<16x128xf32, #tpu.memory_space<vmem>>, vector<16x128xf32>
    %c0_1 = arith.constant 0 : index
    %c0_2 = arith.constant 0 : index
    %1 = vector.load %arg3[%c0_1, %c0_2] : memref<128x128xf32, #tpu.memory_space<vmem>>, vector<128x128xf32>
    %cst = arith.constant dense<0.000000e+00> : vector<16x128xf32>
    %2 = tpu.matmul %0, %1, %cst {dimension_numbers = #tpu.dot_dimension_numbers<[1], [0], [0], [1], [0, 0, 1, 1], [], []>} : vector<16x128xf32>, vector<128x128xf32>, vector<16x128xf32> -> vector<16x128xf32>
    %c0_3 = arith.constant 0 : index
    %c0_4 = arith.constant 0 : index
    %3 = vector.load %arg4[%c0_3, %c0_4] : memref<1x128xf32, #tpu.memory_space<vmem>>, vector<1x128xf32>
    %4 = vector.broadcast %3 : vector<1x128xf32> to vector<16x128xf32>
    %5 = arith.addf %2, %4 : vector<16x128xf32>
    %cst_5 = arith.constant 0.000000e+00 : f32
    %6 = vector.broadcast %cst_5 : f32 to vector<16x128xf32>
    %7 = arith.maximumf %5, %6 : vector<16x128xf32>
    %c0_6 = arith.constant 0 : index
    %c0_7 = arith.constant 0 : index
    %8 = vector.load %arg5[%c0_6, %c0_7] : memref<128x128xf32, #tpu.memory_space<vmem>>, vector<128x128xf32>
    %cst_8 = arith.constant dense<0.000000e+00> : vector<16x128xf32>
    %9 = tpu.matmul %7, %8, %cst_8 {dimension_numbers = #tpu.dot_dimension_numbers<[1], [0], [0], [1], [0, 0, 1, 1], [], []>} : vector<16x128xf32>, vector<128x128xf32>, vector<16x128xf32> -> vector<16x128xf32>
    %c0_9 = arith.constant 0 : index
    %c0_10 = arith.constant 0 : index
    %10 = vector.load %arg6[%c0_9, %c0_10] : memref<1x128xf32, #tpu.memory_space<vmem>>, vector<1x128xf32>
    %11 = vector.broadcast %10 : vector<1x128xf32> to vector<16x128xf32>
    %12 = arith.addf %9, %11 : vector<16x128xf32>
    %13 = arith.negf %12 : vector<16x128xf32>
    %14 = math.exp %13 : vector<16x128xf32>
    %cst_11 = arith.constant 1.000000e+00 : f32
    %15 = vector.broadcast %cst_11 : f32 to vector<16x128xf32>
    %16 = arith.addf %15, %14 : vector<16x128xf32>
    %17 = arith.divf %15, %16 : vector<16x128xf32>
    %c0_12 = arith.constant 0 : index
    %c0_13 = arith.constant 0 : index
    %18 = vector.load %arg1[%c0_12, %c0_13] : memref<16x128xf32, #tpu.memory_space<vmem>>, vector<16x128xf32>
    %19 = arith.mulf %18, %17 : vector<16x128xf32>
    %c0_14 = arith.constant 0 : index
    %c0_15 = arith.constant 0 : index
    %20 = vector.load %arg7[%c0_14, %c0_15] : memref<16x128xf32, #tpu.memory_space<vmem>>, vector<16x128xf32>
    tpu.vector_store %arg7[%c0_14, %c0_15], %19 {strides = array<i32>} : memref<16x128xf32, #tpu.memory_space<vmem>>, vector<16x128xf32>,
    return
  }
  func.func @transform_0(%arg0: i32) -> (i32, i32) {
    %c0_i32 = arith.constant 0 : i32
    %c0_i32_0 = arith.constant 0 : i32
    return %arg0, %c0_i32 : i32, i32
  }
  func.func @transform_1(%arg0: i32) -> (i32, i32) {
    %c0_i32 = arith.constant 0 : i32
    %c0_i32_0 = arith.constant 0 : i32
    return %arg0, %c0_i32 : i32, i32
  }
  func.func @transform_2(%arg0: i32) -> (i32, i32) {
    %c0_i32 = arith.constant 0 : i32
    %c0_i32_0 = arith.constant 0 : i32
    %c0_i32_1 = arith.constant 0 : i32
    return %c0_i32, %c0_i32_0 : i32, i32
  }
  func.func @transform_3(%arg0: i32) -> (i32, i32) {
    %c0_i32 = arith.constant 0 : i32
    %c0_i32_0 = arith.constant 0 : i32
    %c0_i32_1 = arith.constant 0 : i32
    return %c0_i32, %c0_i32_0 : i32, i32
  }
  func.func @transform_4(%arg0: i32) -> (i32, i32) {
    %c0_i32 = arith.constant 0 : i32
    %c0_i32_0 = arith.constant 0 : i32
    %c0_i32_1 = arith.constant 0 : i32
    return %c0_i32, %c0_i32_0 : i32, i32
  }
  func.func @transform_5(%arg0: i32) -> (i32, i32) {
    %c0_i32 = arith.constant 0 : i32
    %c0_i32_0 = arith.constant 0 : i32
    %c0_i32_1 = arith.constant 0 : i32
    return %c0_i32, %c0_i32_0 : i32, i32
  }
  func.func @transform_6(%arg0: i32) -> (i32, i32) {
    %c0_i32 = arith.constant 0 : i32
    %c0_i32_0 = arith.constant 0 : i32
    return %arg0, %c0_i32 : i32, i32
  }
}

</mosaic_0001>

<llo_original>
// kernel: tpu_custom_call.1
$region0: #{tpu_custom_call.1}
  #allocation0 [shape = 'u32[]', space=smem, size = 0x4, offset = 0x4, fixed_abs, tag = 'smem constant byte address 0x4 - core index']
  #allocation1 [shape = 'u32[72,128]{1,0:T(1,128)}', space=vmem, size = 0x9000, scoped, tag = 'internal scratch']
  %s0 = inlined_call_operand.hbm [shape: f32[16,128], index: 0, kind: input, shape index: {}]
  %s1 = inlined_call_operand.hbm [shape: f32[16,128], index: 1, kind: input, shape index: {}]
  %s2 = inlined_call_operand.hbm [shape: f32[128,128], index: 2, kind: input, shape index: {}]
  %s3 = inlined_call_operand.vmem [shape: f32[1,128], index: 3, kind: input, shape index: {}]
  %s4 = inlined_call_operand.hbm [shape: f32[128,128], index: 4, kind: input, shape index: {}]
  %s5 = inlined_call_operand.vmem [shape: f32[1,128], index: 5, kind: input, shape index: {}]
  %s6 = inlined_call_operand.hbm [shape: f32[16,128], index: 6, kind: output, shape index: {}]
  %s7 = sld [smem:[#allocation0]]
  $region50: #{tpu_custom_call.1} parent=0
    _
  %s9 = ssub.s32 1, %s7
  %s10 = scalar_select 0, %s9, %s7
  $region1: #{tpu_custom_call.1} parent=0
    #allocation2 [shape = 'u8[8192]{0}', space=vmem, size = 0x2000, scoped, tag = 'input window, operand 0, single buffered']
    #allocation3 [shape = 's32[1]{0}', space=sflag, size = 0x4, scoped, tag = 'scoped memory for tpu_custom_call.1']
    #allocation4 [shape = 's32[1]{0}', space=sflag, size = 0x4, scoped, tag = 'scoped memory for tpu_custom_call.1']
    #allocation5 [shape = 'u8[8192]{0}', space=vmem, size = 0x2000, scoped, tag = 'input window, operand 1, single buffered']
    #allocation6 [shape = 's32[1]{0}', space=sflag, size = 0x4, scoped, tag = 'scoped memory for tpu_custom_call.1']
    #allocation7 [shape = 'u8[65536]{0}', space=vmem, size = 0x10000, scoped, tag = 'input window, operand 2, single buffered']
    #allocation8 [shape = 'u8[65536]{0}', space=vmem, size = 0x10000, scoped, tag = 'input window, operand 4, single buffered']
    #allocation9 [shape = 's32[1]{0}', space=sflag, size = 0x4, scoped, tag = 'scoped memory for tpu_custom_call.1']
    #allocation10 [shape = 'u8[8192]{0}', space=vmem, size = 0x2000, scoped, tag = 'output window, operand 0, single buffered']
    %11 = vsyncpa [#allocation3], 0
    %12 = vsyncpa [#allocation6], 0
    %13 = vsyncpa [#allocation9], 0
    %14 = vsyncpa [#allocation4], 0
    // Predicated region
    $region2: #{tpu_custom_call.1} parent=1 // pred_check
      _
    $region3: #{tpu_custom_call.1} parent=1 // pred_check_branch
      %16 = sbr.rel (0) target = $region5
    $region4: #{tpu_custom_call.1} parent=1 // pred_region
      %18 = vsyncadd [#allocation3], 0
      %s19 = sshll.u32 %s0, 4
      %s20 = int_to_ptr.hbm [resolvable:$true] %s19
      %s21 = sshll.u32 [#allocation2], 4
      %s22 = int_to_ptr.vmem [resolvable:$true] %s21
      %27 = dma.hbm_to_vmem [thread:$0]  %s20, 256, %s22, [#allocation3], 128, 128, 8
    $region5: #{tpu_custom_call.1} parent=1 // pred_fallthru
      _
    // Predicated region
    $region6: #{tpu_custom_call.1} parent=1 // pred_check
      _
    $region7: #{tpu_custom_call.1} parent=1 // pred_check_branch
      %29 = sbr.rel (0) target = $region9
    $region8: #{tpu_custom_call.1} parent=1 // pred_region
      %31 = vsyncadd [#allocation6], 0
      %s32 = sshll.u32 %s1, 4
      %s33 = int_to_ptr.hbm [resolvable:$true] %s32
      %s34 = sshll.u32 [#allocation5], 4
      %s35 = int_to_ptr.vmem [resolvable:$true] %s34
      %40 = dma.hbm_to_vmem [thread:$0]  %s33, 256, %s35, [#allocation6], 128, 128, 8
    $region9: #{tpu_custom_call.1} parent=1 // pred_fallthru
      _
    // Predicated region
    $region10: #{tpu_custom_call.1} parent=1 // pred_check
      _
    $region11: #{tpu_custom_call.1} parent=1 // pred_check_branch
      %42 = sbr.rel (0) target = $region13
    $region12: #{tpu_custom_call.1} parent=1 // pred_region
      %44 = vsyncadd [#allocation6], 0
      %s45 = sshll.u32 %s2, 4
      %s46 = int_to_ptr.hbm [resolvable:$true] %s45
      %s47 = sshll.u32 [#allocation7], 4
      %s48 = int_to_ptr.vmem [resolvable:$true] %s47
      %53 = dma.hbm_to_vmem [thread:$0]  %s46, 2048, %s48, [#allocation6], 128, 128, 8
    $region13: #{tpu_custom_call.1} parent=1 // pred_fallthru
      _
    // Predicated region
    $region14: #{tpu_custom_call.1} parent=1 // pred_check
      _
    $region15: #{tpu_custom_call.1} parent=1 // pred_check_branch
      %55 = sbr.rel (0) target = $region17
    $region16: #{tpu_custom_call.1} parent=1 // pred_region
      _
    $region17: #{tpu_custom_call.1} parent=1 // pred_fallthru
      _
    // Predicated region
    $region18: #{tpu_custom_call.1} parent=1 // pred_check
      _
    $region19: #{tpu_custom_call.1} parent=1 // pred_check_branch
      %57 = sbr.rel (0) target = $region21
    $region20: #{tpu_custom_call.1} parent=1 // pred_region
      %59 = vsyncadd [#allocation9], 0
      %s60 = sshll.u32 %s4, 4
      %s61 = int_to_ptr.hbm [resolvable:$true] %s60
      %s62 = sshll.u32 [#allocation8], 4
      %s63 = int_to_ptr.vmem [resolvable:$true] %s62
      %68 = dma.hbm_to_vmem [thread:$0]  %s61, 2048, %s63, [#allocation9], 128, 128, 8
    $region21: #{tpu_custom_call.1} parent=1 // pred_fallthru
      _
    // Predicated region
    $region22: #{tpu_custom_call.1} parent=1 // pred_check
      _
    $region23: #{tpu_custom_call.1} parent=1 // pred_check_branch
      %70 = sbr.rel (0) target = $region25
    $region24: #{tpu_custom_call.1} parent=1 // pred_region
      _
    $region25: #{tpu_custom_call.1} parent=1 // pred_fallthru
      _
    // Predicated region
    $region26: #{tpu_custom_call.1} parent=1 // pred_check
      _
    $region27: #{tpu_custom_call.1} parent=1 // pred_check_branch
      %72 = sbr.rel (0) target = $region29
    $region28: #{tpu_custom_call.1} parent=1 // pred_region
      %74 = dma.done [#allocation3], 256
    $region29: #{tpu_custom_call.1} parent=1 // pred_fallthru
      _
    // Predicated region
    $region30: #{tpu_custom_call.1} parent=1 // pred_check
      _
    $region31: #{tpu_custom_call.1} parent=1 // pred_check_branch
      %76 = sbr.rel (0) target = $region33
    $region32: #{tpu_custom_call.1} parent=1 // pred_region
      %78 = dma.done [#allocation6], 256
    $region33: #{tpu_custom_call.1} parent=1 // pred_fallthru
      _
    // Predicated region
    $region34: #{tpu_custom_call.1} parent=1 // pred_check
      _
    $region35: #{tpu_custom_call.1} parent=1 // pred_check_branch
      %80 = sbr.rel (0) target = $region37
    $region36: #{tpu_custom_call.1} parent=1 // pred_region
      %82 = dma.done [#allocation6], 2048
    $region37: #{tpu_custom_call.1} parent=1 // pred_fallthru
      _
    // Predicated region
    $region38: #{tpu_custom_call.1} parent=1 // pred_check
      _
    $region39: #{tpu_custom_call.1} parent=1 // pred_check_branch
      %84 = sbr.rel (0) target = $region41
    $region40: #{tpu_custom_call.1} parent=1 // pred_region
      %86 = dma.done [#allocation9], 2048
    $region41: #{tpu_custom_call.1} parent=1 // pred_fallthru
      _
    %v87 = vld [vmem:[#allocation5] sm:$0xff]
    %v88 = vld [vmem:[#allocation5 + $0x8] sm:$0xff]
    %v89 = vld [vmem:[#allocation7] sm:$0xff]
    %v90 = vld [vmem:[#allocation7 + $0x8] sm:$0xff]
    %v91 = vld [vmem:[#allocation7 + $0x10] sm:$0xff]
    %v92 = vld [vmem:[#allocation7 + $0x18] sm:$0xff]
    %v93 = vld [vmem:[#allocation7 + $0x20] sm:$0xff]
    %v94 = vld [vmem:[#allocation7 + $0x28] sm:$0xff]
    %v95 = vld [vmem:[#allocation7 + $0x30] sm:$0xff]
    %v96 = vld [vmem:[#allocation7 + $0x38] sm:$0xff]
    %v97 = vld [vmem:[#allocation7 + $0x40] sm:$0xff]
    %v98 = vld [vmem:[#allocation7 + $0x48] sm:$0xff]
    %v99 = vld [vmem:[#allocation7 + $0x50] sm:$0xff]
    %v100 = vld [vmem:[#allocation7 + $0x58] sm:$0xff]
    %v101 = vld [vmem:[#allocation7 + $0x60] sm:$0xff]
    %v102 = vld [vmem:[#allocation7 + $0x68] sm:$0xff]
    %v103 = vld [vmem:[#allocation7 + $0x70] sm:$0xff]
    %v104 = vld [vmem:[#allocation7 + $0x78] sm:$0xff]
    %v105 = vld [vmem:[%s3] sm:$0x1]
    %v107 = vperm.slane %v105, 0
    %109 = vmatpush.msra.mxu0 %v104
    %110 = vmatpush.msra.mxu0 %v103
    %111 = vmatpush.msra.mxu0 %v102
    %112 = vmatpush.msra.mxu0 %v101
    %113 = vmatpush.msra.mxu0 %v100
    %114 = vmatpush.msra.mxu0 %v99
    %115 = vmatpush.msra.mxu0 %v98
    %116 = vmatpush.msra.mxu0 %v97
    %117 = vmatpush.msra.mxu0 %v96
    %118 = vmatpush.msra.mxu0 %v95
    %119 = vmatpush.msra.mxu0 %v94
    %120 = vmatpush.msra.mxu0 %v93
    %121 = vmatpush.msra.mxu0 %v92
    %122 = vmatpush.msra.mxu0 %v91
    %123 = vmatpush.msra.mxu0 %v90
    %124 = vmatpush.msra.mxu0 %v89
    %125 = vmatmul.f32.gmra.mxu0 %v87
    %v126 = vpop.f32.mrf.mxu0
    %v127 = vadd.f32 %v107, %v126
    %128 = vmatmul.f32.gmra.mxu0 %v88
    %v129 = vpop.f32.mrf.mxu0
    %v130 = vadd.f32 %v107, %v129
    %131 = vdwg.mxu0
    %v132 = vmax.f32 %v127, 0.0
    %v133 = vmax.f32 %v130, 0.0
    %v134 = vld [vmem:[#allocation8] sm:$0xff]
    %v135 = vld [vmem:[#allocation8 + $0x8] sm:$0xff]
    %v136 = vld [vmem:[#allocation8 + $0x10] sm:$0xff]
    %v137 = vld [vmem:[#allocation8 + $0x18] sm:$0xff]
    %v138 = vld [vmem:[#allocation8 + $0x20] sm:$0xff]
    %v139 = vld [vmem:[#allocation8 + $0x28] sm:$0xff]
    %v140 = vld [vmem:[#allocation8 + $0x30] sm:$0xff]
    %v141 = vld [vmem:[#allocation8 + $0x38] sm:$0xff]
    %v142 = vld [vmem:[#allocation8 + $0x40] sm:$0xff]
    %v143 = vld [vmem:[#allocation8 + $0x48] sm:$0xff]
    %v144 = vld [vmem:[#allocation8 + $0x50] sm:$0xff]
    %v145 = vld [vmem:[#allocation8 + $0x58] sm:$0xff]
    %v146 = vld [vmem:[#allocation8 + $0x60] sm:$0xff]
    %v147 = vld [vmem:[#allocation8 + $0x68] sm:$0xff]
    %v148 = vld [vmem:[#allocation8 + $0x70] sm:$0xff]
    %v149 = vld [vmem:[#allocation8 + $0x78] sm:$0xff]
    %v150 = vld [vmem:[%s5] sm:$0x1]
    %v152 = vperm.slane %v150, 0
    %154 = vmatpush.msra.mxu0 %v149
    %155 = vmatpush.msra.mxu0 %v148
    %156 = vmatpush.msra.mxu0 %v147
    %157 = vmatpush.msra.mxu0 %v146
    %158 = vmatpush.msra.mxu0 %v145
    %159 = vmatpush.msra.mxu0 %v144
    %160 = vmatpush.msra.mxu0 %v143
    %161 = vmatpush.msra.mxu0 %v142
    %162 = vmatpush.msra.mxu0 %v141
    %163 = vmatpush.msra.mxu0 %v140
    %164 = vmatpush.msra.mxu0 %v139
    %165 = vmatpush.msra.mxu0 %v138
    %166 = vmatpush.msra.mxu0 %v137
    %167 = vmatpush.msra.mxu0 %v136
    %168 = vmatpush.msra.mxu0 %v135
    %169 = vmatpush.msra.mxu0 %v134
    %170 = vmatmul.f32.gmra.mxu0 %v132
    %v171 = vpop.f32.mrf.mxu0
    %v172 = vadd.f32 %v152, %v171
    %173 = vmatmul.f32.gmra.mxu0 %v133
    %v174 = vpop.f32.mrf.mxu0
    %v175 = vadd.f32 %v152, %v174
    %176 = vdwg.mxu0
    %v177 = vxor.u32 %v172, 2147483648
    %v178 = vxor.u32 %v175, 2147483648
    %v179 = vmul.f32 %v177, 1.442695
    %v180 = vpow.pop %v179
    %v181 = vmul.f32 %v178, 1.442695
    %v182 = vpow.pop %v181
    %v183 = vadd.f32 %v180, 1.0
    %v184 = vadd.f32 %v182, 1.0
    %v185 = vrcp.pop %v183
    %v186 = vmul.f32 %v183, %v185
    %v187 = vsub.f32 1.0, %v186
    %v188 = vmul.f32 %v185, %v187
    %v189 = vadd.f32 %v185, %v188
    %vm190 = vweird.f32 %v183
    %vm191 = vweird.f32 %v185
    %vm192 = vmor %vm190, %vm191
    %v193 = vsel %vm192, %v185, %v189
    %v194 = vand.u32 2147483647, %v183
    %vm195 = vcmp.eq.f32.partialorder %v194, 8.507059e+37
    %v196 = vand.u32 %v183, 2147483648
    %v197 = vor.u32 1.1754944e-38, %v196
    %v198 = vsel %vm195, %v197, %v193
    %v199 = vmul.f32 1.0, %v198
    %v200 = vrcp.pop %v184
    %v201 = vmul.f32 %v184, %v200
    %v202 = vsub.f32 1.0, %v201
    %v203 = vmul.f32 %v200, %v202
    %v204 = vadd.f32 %v200, %v203
    %vm205 = vweird.f32 %v184
    %vm206 = vweird.f32 %v200
    %vm207 = vmor %vm205, %vm206
    %v208 = vsel %vm207, %v200, %v204
    %v209 = vand.u32 2147483647, %v184
    %vm210 = vcmp.eq.f32.partialorder %v209, 8.507059e+37
    %v211 = vand.u32 %v184, 2147483648
    %v212 = vor.u32 1.1754944e-38, %v211
    %v213 = vsel %vm210, %v212, %v208
    %v214 = vmul.f32 1.0, %v213
    %v215 = vld [vmem:[#allocation2] sm:$0xff]
    %v216 = vld [vmem:[#allocation2 + $0x8] sm:$0xff]
    %v217 = vmul.f32 %v215, %v199
    %v218 = vmul.f32 %v216, %v214
    %219 = vst [vmem:[#allocation10] sm:$0xff] %v217
    %220 = vst [vmem:[#allocation10 + $0x8] sm:$0xff] %v218
    // Predicated region
    $region42: #{tpu_custom_call.1} parent=1 // pred_check
      _
    $region43: #{tpu_custom_call.1} parent=1 // pred_check_branch
      %222 = sbr.rel (0) target = $region45
    $region44: #{tpu_custom_call.1} parent=1 // pred_region
      %224 = vsyncadd [#allocation4], 0
      %s225 = sshll.u32 [#allocation10], 4
      %s226 = int_to_ptr.vmem [resolvable:$true] %s225
      %s227 = sshll.u32 %s6, 4
      %s228 = int_to_ptr.hbm [resolvable:$true] %s227
      %233 = dma.vmem_to_hbm [thread:$0]  %s226, 256, %s228, [#allocation4], 128, 128, 8
    $region45: #{tpu_custom_call.1} parent=1 // pred_fallthru
      _
    // Predicated region
    $region46: #{tpu_custom_call.1} parent=1 // pred_check
      _
    $region47: #{tpu_custom_call.1} parent=1 // pred_check_branch
      %235 = sbr.rel (0) target = $region49
    $region48: #{tpu_custom_call.1} parent=1 // pred_region
      %237 = dma.done [#allocation4], 256
    $region49: #{tpu_custom_call.1} parent=1 // pred_fallthru
      _
    %238 = vsyncpa [#allocation3], 1
    %239 = vsyncpa [#allocation6], 1
    %240 = vsyncpa [#allocation9], 1
    %241 = vsyncpa [#allocation4], 1

</llo_original>
